<compile_context>
chip_gen: v5e
topology: v5e:2x2
jax: 0.10.0
libtpu: 0.0.40
codegen_flags: <defaults>
</compile_context>

<pallas_src>
import jax
import jax.numpy as jnp
from jax.experimental import pallas as pl
from jax.experimental.pallas import tpu as pltpu

_LANE_WIDTHS = (2048, 1024, 512, 256, 128)   # lane-dense last-dim candidates
_TARGET_TILE_BYTES = 2 * 1024 * 1024         # ~2 MiB blocks


def _sublane_multiple(dtype):
    return {4: 8, 2: 16, 1: 32}.get(jnp.dtype(dtype).itemsize, 8)


def _choose_layout(n, dtype):
    """Pick (rows, width, tile_rows) for a lane-dense 2-D view of n elements."""
    itemsize = jnp.dtype(dtype).itemsize
    width = 128
    for w in _LANE_WIDTHS:
        if n % w == 0:
            width = w
            break
    rows = n // width
    sub = _sublane_multiple(dtype)
    max_tm = max(sub, _TARGET_TILE_BYTES // (width * itemsize))
    if rows <= max_tm:
        return rows, width, rows            # single full-extent block
    tm = rows                               # fallback: full extent (always legal)
    for cand in range(sub, max_tm + 1, sub):
        if rows % cand == 0:
            tm = cand                       # keep the largest conforming divisor
    # TODO(synk): row counts with no small multiple-of-`sub` divisor fall back
    # to one huge block; pad the row count instead if such shapes ever matter.
    return rows, width, tm


def _to_slab(x):
    """Flatten to a lane-dense (rows, width) slab; edge-pad if size % 128 != 0."""
    flat = x.reshape(-1)
    n = flat.shape[0]
    pad = (-n) % 128
    if pad:
        flat = jnp.pad(flat, (0, pad), mode="edge")   # edge pad: min/max safe
    rows, width, tm = _choose_layout(flat.shape[0], flat.dtype)
    return flat.reshape(rows, width), n, tm


# ------------------------- kernels -------------------------

def _minmax_kernel(x_ref, min_ref, max_ref, min_acc, max_acc):
    """Running elementwise min/max on the VPU; one XLU reduce in the epilogue."""
    i = pl.program_id(1)
    x = x_ref[...]

    @pl.when(i == 0)
    def _init():
        min_acc[...] = x
        max_acc[...] = x

    @pl.when(i > 0)
    def _accumulate():
        min_acc[...] = jnp.minimum(min_acc[...], x)
        max_acc[...] = jnp.maximum(max_acc[...], x)

    @pl.when(i == pl.num_programs(1) - 1)
    def _finalize():
        min_ref[...] = jnp.broadcast_to(jnp.min(min_acc[...]), min_ref.shape)
        max_ref[...] = jnp.broadcast_to(jnp.max(max_acc[...]), max_ref.shape)


def _normalize_kernel(min_ref, max_ref, x_ref, o_ref):
    # 2 * (x - mn) / (mx - mn) - 1  ==  x * scale + bias
    mn = min_ref[0, 0]
    mx = max_ref[0, 0]
    scale = 2.0 / (mx - mn)        # no eps guard: matches the PyTorch module
    bias = -mn * scale - 1.0
    o_ref[...] = (x_ref[...] * scale + bias).astype(o_ref.dtype)


def _denormalize_kernel(min_ref, max_ref, x_ref, o_ref):
    # (x + 1) * (mx - mn) / 2 + mn  ==  x * scale + (scale + mn)
    mn = min_ref[0, 0]
    mx = max_ref[0, 0]
    scale = (mx - mn) * 0.5
    o_ref[...] = (x_ref[...] * scale + (scale + mn)).astype(o_ref.dtype)


# ------------------------- pallas_call wrappers -------------------------

def _compute_minmax(x2d, tm):
    rows, width = x2d.shape
    nt = rows // tm
    # Shard the reduction read across TensorCores (matters on v7x's 2 TCs).
    splits = 2 if (nt >= 2 and nt % 2 == 0) else 1
    ntps = nt // splits

    mins, maxs = pl.pallas_call(
        _minmax_kernel,
        out_shape=(jax.ShapeDtypeStruct((8 * splits, 128), x2d.dtype),
                   jax.ShapeDtypeStruct((8 * splits, 128), x2d.dtype)),
        grid_spec=pltpu.PrefetchScalarGridSpec(
            num_scalar_prefetch=0,
            grid=(splits, ntps),
            in_specs=[pl.BlockSpec((tm, width),
                                   lambda c, i: (c * ntps + i, 0))],
            out_specs=(pl.BlockSpec((8, 128), lambda c, i: (c, 0)),
                       pl.BlockSpec((8, 128), lambda c, i: (c, 0))),
            scratch_shapes=[pltpu.VMEM((tm, width), x2d.dtype),
                            pltpu.VMEM((tm, width), x2d.dtype)]),
        compiler_params=pltpu.CompilerParams(
            dimension_semantics=("parallel", "arbitrary")),
    )(x2d)

    # Combine the (tiny) per-core partials; store as f32 (1,1) SMEM scalars.
    mn = jnp.min(mins).astype(jnp.float32).reshape(1, 1)
    mx = jnp.max(maxs).astype(jnp.float32).reshape(1, 1)
    return mn, mx


def _elementwise_affine(kernel_fn, x2d, tm, mn, mx):
    rows, width = x2d.shape
    nt = rows // tm
    return pl.pallas_call(
        kernel_fn,
        out_shape=jax.ShapeDtypeStruct(x2d.shape, x2d.dtype),
        grid_spec=pltpu.PrefetchScalarGridSpec(
            num_scalar_prefetch=0,
            grid=(nt,),
            in_specs=[pl.BlockSpec(memory_space=pltpu.MemorySpace.SMEM),
                      pl.BlockSpec(memory_space=pltpu.MemorySpace.SMEM),
                      pl.BlockSpec((tm, width), lambda i: (i, 0))],
            out_specs=pl.BlockSpec((tm, width), lambda i: (i, 0))),
        compiler_params=pltpu.CompilerParams(
            dimension_semantics=("parallel",)),
    )(mn, mx, x2d)


# ------------------------- public API -------------------------

def minmax_normalize(x):
    x2d, n, tm = _to_slab(x)
    mn, mx = _compute_minmax(x2d, tm)
    y2d = _elementwise_affine(_normalize_kernel, x2d, tm, mn, mx)
    if y2d.size != n:
        y = y2d.reshape(-1)[:n].reshape(x.shape)
    else:
        y = y2d.reshape(x.shape)
    return y, mn, mx


def minmax_denormalize(x, mn, mx):
    x2d, n, tm = _to_slab(x)
    y2d = _elementwise_affine(_denormalize_kernel, x2d, tm, mn, mx)
    if y2d.size != n:
        return y2d.reshape(-1)[:n].reshape(x.shape)
    return y2d.reshape(x.shape)


class MinMaxNorm:
    """Stateful port of the PyTorch MinMaxNorm module (no learnable params).

    NOTE: min_val/max_val are Python-side state (as in the nn.Module); use the
    functional minmax_normalize/minmax_denormalize helpers inside jax.jit/scan.
    """

    def __init__(self):
        self.min_val = None   # (1, 1) float32
        self.max_val = None   # (1, 1) float32

    def __call__(self, x, reverse=False):
        if not reverse:
            y, self.min_val, self.max_val = minmax_normalize(x)
            return y
        if self.min_val is None or self.max_val is None:
            raise ValueError("Cannot reverse normalize without first normalizing")
        return minmax_denormalize(x, self.min_val, self.max_val)


# ------------------------- main -------------------------

if __name__ == "__main__":
    key = jax.random.PRNGKey(0)
    k1, k2 = jax.random.split(key)

    def _check(x):
        norm = MinMaxNorm()
        y = jax.block_until_ready(norm(x, reverse=False))
        mn_ref, mx_ref = jnp.min(x), jnp.max(x)
        y_ref = 2.0 * (x - mn_ref) / (mx_ref - mn_ref) - 1.0
        assert y.shape == x.shape and y.dtype == x.dtype
        assert jnp.allclose(y, y_ref, atol=1e-5, rtol=1e-5)
        x_back = jax.block_until_ready(norm(y, reverse=True))
        assert jnp.allclose(x_back, x, atol=1e-4, rtol=1e-4)

    # Small NCHW input (as the surrounding SwinIR code would feed it).
    _check(jax.random.normal(k1, (2, 4, 16, 16), dtype=jnp.float32))
    # Larger feature map: exercises the multi-tile grid and the 2-way
    # "parallel" split of the reduction pass (2 TensorCores on v7x).
    _check(jax.random.normal(k2, (2, 8, 256, 256), dtype=jnp.float32))

    print("KERNEL_OK")
</pallas_src>

<mosaic_0001>
module attributes {stable_mosaic.version = 11 : i64} {
  func.func @_minmax_kernel(%arg0: i32, %arg1: i32, %arg2: memref<1x2048xf32, #tpu.memory_space<vmem>>, %arg3: memref<8x128xf32, #tpu.memory_space<vmem>>, %arg4: memref<8x128xf32, #tpu.memory_space<vmem>>, %arg5: memref<1x2048xf32, #tpu.memory_space<vmem>>, %arg6: memref<1x2048xf32, #tpu.memory_space<vmem>>) attributes {dimension_semantics = [#tpu.dimension_semantics<parallel>, #tpu.dimension_semantics<arbitrary>], iteration_bounds = array<i64: 1, 1>, scalar_prefetch = 0 : i64, scratch_operands = 2 : i64, tpu.core_type = #tpu.core_type<tc>, window_params = [{transform_indices = @transform_0, window_bounds = array<i64: 1, 2048>}, {transform_indices = @transform_1, window_bounds = array<i64: 8, 128>}, {transform_indices = @transform_2, window_bounds = array<i64: 8, 128>}]} {
    %c0 = arith.constant 0 : index
    %c0_0 = arith.constant 0 : index
    %0 = vector.load %arg2[%c0, %c0_0] : memref<1x2048xf32, #tpu.memory_space<vmem>>, vector<1x2048xf32>
    %c0_i32 = arith.constant 0 : i32
    %1 = arith.cmpi eq, %arg1, %c0_i32 : i32
    %2 = arith.extui %1 : i1 to i32
    %c0_i32_1 = arith.constant 0 : i32
    %3 = arith.cmpi ne, %2, %c0_i32_1 : i32
    scf.if %3 {
      %c0_6 = arith.constant 0 : index
      %c0_7 = arith.constant 0 : index
      %10 = vector.load %arg5[%c0_6, %c0_7] : memref<1x2048xf32, #tpu.memory_space<vmem>>, vector<1x2048xf32>
      tpu.vector_store %arg5[%c0_6, %c0_7], %0 {strides = array<i32>} : memref<1x2048xf32, #tpu.memory_space<vmem>>, vector<1x2048xf32>,
      %c0_8 = arith.constant 0 : index
      %c0_9 = arith.constant 0 : index
      %11 = vector.load %arg6[%c0_8, %c0_9] : memref<1x2048xf32, #tpu.memory_space<vmem>>, vector<1x2048xf32>
      tpu.vector_store %arg6[%c0_8, %c0_9], %0 {strides = array<i32>} : memref<1x2048xf32, #tpu.memory_space<vmem>>, vector<1x2048xf32>,
    } else {
    }
    %c0_i32_2 = arith.constant 0 : i32
    %4 = arith.cmpi sgt, %arg1, %c0_i32_2 : i32
    %5 = arith.extui %4 : i1 to i32
    %c0_i32_3 = arith.constant 0 : i32
    %6 = arith.cmpi ne, %5, %c0_i32_3 : i32
    scf.if %6 {
      %c0_6 = arith.constant 0 : index
      %c0_7 = arith.constant 0 : index
      %10 = vector.load %arg5[%c0_6, %c0_7] : memref<1x2048xf32, #tpu.memory_space<vmem>>, vector<1x2048xf32>
      %11 = arith.minimumf %10, %0 : vector<1x2048xf32>
      %c0_8 = arith.constant 0 : index
      %c0_9 = arith.constant 0 : index
      %12 = vector.load %arg5[%c0_8, %c0_9] : memref<1x2048xf32, #tpu.memory_space<vmem>>, vector<1x2048xf32>
      tpu.vector_store %arg5[%c0_8, %c0_9], %11 {strides = array<i32>} : memref<1x2048xf32, #tpu.memory_space<vmem>>, vector<1x2048xf32>,
      %c0_10 = arith.constant 0 : index
      %c0_11 = arith.constant 0 : index
      %13 = vector.load %arg6[%c0_10, %c0_11] : memref<1x2048xf32, #tpu.memory_space<vmem>>, vector<1x2048xf32>
      %14 = arith.maximumf %13, %0 : vector<1x2048xf32>
      %c0_12 = arith.constant 0 : index
      %c0_13 = arith.constant 0 : index
      %15 = vector.load %arg6[%c0_12, %c0_13] : memref<1x2048xf32, #tpu.memory_space<vmem>>, vector<1x2048xf32>
      tpu.vector_store %arg6[%c0_12, %c0_13], %14 {strides = array<i32>} : memref<1x2048xf32, #tpu.memory_space<vmem>>, vector<1x2048xf32>,
    } else {
    }
    %c0_i32_4 = arith.constant 0 : i32
    %7 = arith.cmpi eq, %arg1, %c0_i32_4 : i32
    %8 = arith.extui %7 : i1 to i32
    %c0_i32_5 = arith.constant 0 : i32
    %9 = arith.cmpi ne, %8, %c0_i32_5 : i32
    scf.if %9 {
      %c0_6 = arith.constant 0 : index
      %c0_7 = arith.constant 0 : index
      %10 = vector.load %arg5[%c0_6, %c0_7] : memref<1x2048xf32, #tpu.memory_space<vmem>>, vector<1x2048xf32>
      %11 = vector.shape_cast %10 : vector<1x2048xf32> to vector<1x1x2048xf32>
      %cst = arith.constant dense<0x7F800000> : vector<1xf32>
      %12 = vector.multi_reduction <minimumf>, %11, %cst [1, 2] : vector<1x1x2048xf32> to vector<1xf32>
      %13 = vector.shape_cast %12 : vector<1xf32> to vector<1x1x1xf32>
      %14 = vector.extract %13[0, 0, 0] : f32 from vector<1x1x1xf32>
      %15 = vector.broadcast %14 : f32 to vector<8x128xf32>
      %c0_8 = arith.constant 0 : index
      %c0_9 = arith.constant 0 : index
      %16 = vector.load %arg3[%c0_8, %c0_9] : memref<8x128xf32, #tpu.memory_space<vmem>>, vector<8x128xf32>
      tpu.vector_store %arg3[%c0_8, %c0_9], %15 {strides = array<i32>} : memref<8x128xf32, #tpu.memory_space<vmem>>, vector<8x128xf32>,
      %c0_10 = arith.constant 0 : index
      %c0_11 = arith.constant 0 : index
      %17 = vector.load %arg6[%c0_10, %c0_11] : memref<1x2048xf32, #tpu.memory_space<vmem>>, vector<1x2048xf32>
      %18 = vector.shape_cast %17 : vector<1x2048xf32> to vector<1x1x2048xf32>
      %cst_12 = arith.constant dense<0xFF800000> : vector<1xf32>
      %19 = vector.multi_reduction <maximumf>, %18, %cst_12 [1, 2] : vector<1x1x2048xf32> to vector<1xf32>
      %20 = vector.shape_cast %19 : vector<1xf32> to vector<1x1x1xf32>
      %21 = vector.extract %20[0, 0, 0] : f32 from vector<1x1x1xf32>
      %22 = vector.broadcast %21 : f32 to vector<8x128xf32>
      %c0_13 = arith.constant 0 : index
      %c0_14 = arith.constant 0 : index
      %23 = vector.load %arg4[%c0_13, %c0_14] : memref<8x128xf32, #tpu.memory_space<vmem>>, vector<8x128xf32>
      tpu.vector_store %arg4[%c0_13, %c0_14], %22 {strides = array<i32>} : memref<8x128xf32, #tpu.memory_space<vmem>>, vector<8x128xf32>,
    } else {
    }
    return
  }
  func.func @transform_0(%arg0: i32, %arg1: i32) -> (i32, i32) {
    %c1_i32 = arith.constant 1 : i32
    %0 = arith.muli %arg0, %c1_i32 : i32
    %1 = arith.addi %0, %arg1 : i32
    %c0_i32 = arith.constant 0 : i32
    %c0_i32_0 = arith.constant 0 : i32
    return %1, %c0_i32 : i32, i32
  }
  func.func @transform_1(%arg0: i32, %arg1: i32) -> (i32, i32) {
    %c0_i32 = arith.constant 0 : i32
    %c0_i32_0 = arith.constant 0 : i32
    return %arg0, %c0_i32 : i32, i32
  }
  func.func @transform_2(%arg0: i32, %arg1: i32) -> (i32, i32) {
    %c0_i32 = arith.constant 0 : i32
    %c0_i32_0 = arith.constant 0 : i32
    return %arg0, %c0_i32 : i32, i32
  }
}

</mosaic_0001>

<llo_original>
// kernel: tpu_custom_call.1
$region0: #{tpu_custom_call.1}
  #allocation0 [shape = 'u32[]', space=smem, size = 0x4, offset = 0x4, fixed_abs, tag = 'smem constant byte address 0x4 - core index']
  #allocation1 [shape = 'u32[72,128]{1,0:T(1,128)}', space=vmem, size = 0x9000, scoped, tag = 'internal scratch']
  #allocation2 [shape = 'f32[1,2048]{1,0:T(1,128)}', space=vmem, size = 0x2000, scoped, tag = 'scratch operand']
  #allocation3 [shape = 'f32[1,2048]{1,0:T(1,128)}', space=vmem, size = 0x2000, scoped, tag = 'scratch operand']
  %s0 = inlined_call_operand.hbm [shape: f32[1,2048], index: 0, kind: input, shape index: {}]
  %s1 = inlined_call_operand.hbm [shape: f32[8,128], index: 1, kind: output, shape index: {0}]
  %s2 = inlined_call_operand.hbm [shape: f32[8,128], index: 2, kind: output, shape index: {1}]
  %3 = xla_tuple %s1, %s2
  %s4 = sld [smem:[#allocation0]]
  $region38: #{tpu_custom_call.1} parent=0
    _
  %s6 = ssub.s32 1, %s4
  %s7 = scalar_select 0, %s6, %s4
  $region1: #{tpu_custom_call.1} parent=0
    #allocation4 [shape = 'u8[8192]{0}', space=vmem, size = 0x2000, scoped, tag = 'input window, operand 0, single buffered']
    #allocation5 [shape = 's32[1]{0}', space=sflag, size = 0x4, scoped, tag = 'scoped memory for tpu_custom_call.1']
    #allocation6 [shape = 's32[1]{0}', space=sflag, size = 0x4, scoped, tag = 'scoped memory for tpu_custom_call.1']
    #allocation7 [shape = 'u8[4096]{0}', space=vmem, size = 0x1000, scoped, tag = 'output window, operand 0, single buffered']
    #allocation8 [shape = 'u8[4096]{0}', space=vmem, size = 0x1000, scoped, tag = 'output window, operand 1, single buffered']
    #allocation9 [shape = 's32[1]{0}', space=sflag, size = 0x4, scoped, tag = 'scoped memory for tpu_custom_call.1']
    %8 = vsyncpa [#allocation5], 0
    %9 = vsyncpa [#allocation6], 0
    %10 = vsyncpa [#allocation9], 0
    // Predicated region
    $region2: #{tpu_custom_call.1} parent=1 // pred_check
      _
    $region3: #{tpu_custom_call.1} parent=1 // pred_check_branch
      %12 = sbr.rel (0) target = $region5
    $region4: #{tpu_custom_call.1} parent=1 // pred_region
      %s13 = sadd.s32 0, 0
      %15 = vsyncadd [#allocation5], 0
      %s16 = smul.addr %s13, 16
      %s17 = scalar_lea.hbm %s0, %s16
      %s19 = sshll.u32 %s17, 4
      %s20 = int_to_ptr.hbm [resolvable:$true] %s19
      %s21 = sshll.u32 [#allocation4], 4
      %s22 = int_to_ptr.vmem [resolvable:$true] %s21
      %24 = dma.hbm_to_vmem [thread:$0]  %s20, 256, %s22, [#allocation5]
    $region5: #{tpu_custom_call.1} parent=1 // pred_fallthru
      _
    // Predicated region
    $region6: #{tpu_custom_call.1} parent=1 // pred_check
      _
    $region7: #{tpu_custom_call.1} parent=1 // pred_check_branch
      %26 = sbr.rel (0) target = $region9
    $region8: #{tpu_custom_call.1} parent=1 // pred_region
      %28 = dma.done [#allocation5], 256
    $region9: #{tpu_custom_call.1} parent=1 // pred_fallthru
      _
    %s29 = sadd.s32 0, 0
    %v30 = vld [vmem:[#allocation4] sm:$0xff]
    %v31 = vld [vmem:[#allocation4 + $0x8] sm:$0xff]
    %p32 = scmp.eq.s32.totalorder 0, 0
    // Predicated region
    $region10: #{tpu_custom_call.1} parent=1 // pred_check
      %p33 = pneg %p32
    $region11: #{tpu_custom_call.1} parent=1 // pred_check_branch
      %35 = sbr.rel (%p33) target = $region13
    $region12: #{tpu_custom_call.1} parent=1 // pred_region
      %36 = vst [vmem:[#allocation2] sm:$0xff] %v30
      %37 = vst [vmem:[#allocation2 + $0x8] sm:$0xff] %v31
      %38 = vst [vmem:[#allocation3] sm:$0xff] %v30
      %39 = vst [vmem:[#allocation3 + $0x8] sm:$0xff] %v31
    $region13: #{tpu_custom_call.1} parent=1 // pred_fallthru
      _
    %p40 = scmp.gt.s32.totalorder 0, 0
    // Predicated region
    $region14: #{tpu_custom_call.1} parent=1 // pred_check
      %p41 = pneg %p40
    $region15: #{tpu_custom_call.1} parent=1 // pred_check_branch
      %43 = sbr.rel (%p41) target = $region17
    $region16: #{tpu_custom_call.1} parent=1 // pred_region
      %v44 = vld [vmem:[#allocation2] sm:$0xff]
      %v45 = vld [vmem:[#allocation2 + $0x8] sm:$0xff]
      %v46 = vmin.f32 %v44, %v30
      %v47 = vmin.f32 %v45, %v31
      %48 = vst [vmem:[#allocation2] sm:$0xff] %v46
      %49 = vst [vmem:[#allocation2 + $0x8] sm:$0xff] %v47
      %v50 = vld [vmem:[#allocation3] sm:$0xff]
      %v51 = vld [vmem:[#allocation3 + $0x8] sm:$0xff]
      %v52 = vmax.f32 %v50, %v30
      %v53 = vmax.f32 %v51, %v31
      %54 = vst [vmem:[#allocation3] sm:$0xff] %v52
      %55 = vst [vmem:[#allocation3 + $0x8] sm:$0xff] %v53
    $region17: #{tpu_custom_call.1} parent=1 // pred_fallthru
      _
    // Predicated region
    $region18: #{tpu_custom_call.1} parent=1 // pred_check
      %p56 = pneg %p32
    $region19: #{tpu_custom_call.1} parent=1 // pred_check_branch
      %58 = sbr.rel (%p56) target = $region21
    $region20: #{tpu_custom_call.1} parent=1 // pred_region
      %v59 = vld [vmem:[#allocation2] sm:$0xff]
      %v60 = vld [vmem:[#allocation2 + $0x8] sm:$0xff]
      %v63 = vperm.slane %v59, 0
      %v64 = vperm.slane %v59, 1
      %v65 = vperm.slane %v59, 2
      %v66 = vperm.slane %v59, 3
      %v67 = vperm.slane %v59, 4
      %v68 = vperm.slane %v59, 5
      %v69 = vperm.slane %v59, 6
      %v70 = vperm.slane %v59, 7
      %v71 = vperm.slane %v60, 0
      %v72 = vperm.slane %v60, 1
      %v73 = vperm.slane %v60, 2
      %v74 = vperm.slane %v60, 3
      %v75 = vperm.slane %v60, 4
      %v76 = vperm.slane %v60, 5
      %v77 = vperm.slane %v60, 6
      %v78 = vperm.slane %v60, 7
      %vm95 = vcmask 1040384
      %v96 = vsel %vm95, %v63, inf
      %v97 = vsel %vm95, %v64, inf
      %v98 = vsel %vm95, %v65, inf
      %v99 = vsel %vm95, %v66, inf
      %v100 = vsel %vm95, %v67, inf
      %v101 = vmin.f32 %v96, %v100
      %v102 = vsel %vm95, %v68, inf
      %v103 = vmin.f32 %v97, %v102
      %v104 = vsel %vm95, %v69, inf
      %v105 = vmin.f32 %v98, %v104
      %v106 = vsel %vm95, %v70, inf
      %v107 = vmin.f32 %v99, %v106
      %v108 = vsel %vm95, %v71, inf
      %v109 = vmin.f32 %v101, %v108
      %v110 = vsel %vm95, %v72, inf
      %v111 = vmin.f32 %v103, %v110
      %v112 = vsel %vm95, %v73, inf
      %v113 = vmin.f32 %v105, %v112
      %v114 = vsel %vm95, %v74, inf
      %v115 = vmin.f32 %v107, %v114
      %v116 = vsel %vm95, %v75, inf
      %v117 = vmin.f32 %v109, %v116
      %v118 = vsel %vm95, %v76, inf
      %v119 = vmin.f32 %v111, %v118
      %v120 = vsel %vm95, %v77, inf
      %v121 = vmin.f32 %v113, %v120
      %v122 = vsel %vm95, %v78, inf
      %v123 = vmin.f32 %v115, %v122
      %v124 = vmin.f32 %v117, %v119
      %v125 = vmin.f32 %v121, %v123
      %v126 = vmin.f32 %v124, %v125
      %127 = vmin.xlane.f32.xlu0 %v126
      %v128 = vpop.xlane.xlu0 %127
      %v129 = vrot.slane %v128, 4
      %v130 = vmin.f32 %v128, %v129
      %v131 = vrot.slane %v130, 2
      %v132 = vmin.f32 %v130, %v131
      %v133 = vrot.slane %v132, 1
      %v134 = vmin.f32 %v132, %v133
      %s135 = vtos %v134
      %v136 = vstv %s135
      %137 = vst [vmem:[#allocation7] sm:$0xff] %v136
      %v138 = vld [vmem:[#allocation3] sm:$0xff]
      %v139 = vld [vmem:[#allocation3 + $0x8] sm:$0xff]
      %v142 = vperm.slane %v138, 0
      %v143 = vperm.slane %v138, 1
      %v144 = vperm.slane %v138, 2
      %v145 = vperm.slane %v138, 3
      %v146 = vperm.slane %v138, 4
      %v147 = vperm.slane %v138, 5
      %v148 = vperm.slane %v138, 6
      %v149 = vperm.slane %v138, 7
      %v150 = vperm.slane %v139, 0
      %v151 = vperm.slane %v139, 1
      %v152 = vperm.slane %v139, 2
      %v153 = vperm.slane %v139, 3
      %v154 = vperm.slane %v139, 4
      %v155 = vperm.slane %v139, 5
      %v156 = vperm.slane %v139, 6
      %v157 = vperm.slane %v139, 7
      %v174 = vsel %vm95, %v142, -inf
      %v175 = vsel %vm95, %v143, -inf
      %v176 = vsel %vm95, %v144, -inf
      %v177 = vsel %vm95, %v145, -inf
      %v178 = vsel %vm95, %v146, -inf
      %v179 = vmax.f32 %v174, %v178
      %v180 = vsel %vm95, %v147, -inf
      %v181 = vmax.f32 %v175, %v180
      %v182 = vsel %vm95, %v148, -inf
      %v183 = vmax.f32 %v176, %v182
      %v184 = vsel %vm95, %v149, -inf
      %v185 = vmax.f32 %v177, %v184
      %v186 = vsel %vm95, %v150, -inf
      %v187 = vmax.f32 %v179, %v186
      %v188 = vsel %vm95, %v151, -inf
      %v189 = vmax.f32 %v181, %v188
      %v190 = vsel %vm95, %v152, -inf
      %v191 = vmax.f32 %v183, %v190
      %v192 = vsel %vm95, %v153, -inf
      %v193 = vmax.f32 %v185, %v192
      %v194 = vsel %vm95, %v154, -inf
      %v195 = vmax.f32 %v187, %v194
      %v196 = vsel %vm95, %v155, -inf
      %v197 = vmax.f32 %v189, %v196
      %v198 = vsel %vm95, %v156, -inf
      %v199 = vmax.f32 %v191, %v198
      %v200 = vsel %vm95, %v157, -inf
      %v201 = vmax.f32 %v193, %v200
      %v202 = vmax.f32 %v195, %v197
      %v203 = vmax.f32 %v199, %v201
      %v204 = vmax.f32 %v202, %v203
      %205 = vmax.xlane.f32.xlu0 %v204
      %v206 = vpop.xlane.xlu0 %205
      %v207 = vrot.slane %v206, 4
      %v208 = vmax.f32 %v206, %v207
      %v209 = vrot.slane %v208, 2
      %v210 = vmax.f32 %v208, %v209
      %v211 = vrot.slane %v210, 1
      %v212 = vmax.f32 %v210, %v211
      %s213 = vtos %v212
      %v214 = vstv %s213
      %215 = vst [vmem:[#allocation8] sm:$0xff] %v214
    $region21: #{tpu_custom_call.1} parent=1 // pred_fallthru
      _
    // Predicated region
    $region22: #{tpu_custom_call.1} parent=1 // pred_check
      _
    $region23: #{tpu_custom_call.1} parent=1 // pred_check_branch
      %217 = sbr.rel (0) target = $region25
    $region24: #{tpu_custom_call.1} parent=1 // pred_region
      %219 = vsyncadd [#allocation6], 0
      %s221 = sshll.u32 [#allocation7], 4
      %s222 = int_to_ptr.vmem [resolvable:$true] %s221
      %s223 = sshll.u32 %s1, 4
      %s224 = int_to_ptr.hbm [resolvable:$true] %s223
      %226 = dma.vmem_to_hbm [thread:$0]  %s222, 128, %s224, [#allocation6]
    $region25: #{tpu_custom_call.1} parent=1 // pred_fallthru
      _
    // Predicated region
    $region26: #{tpu_custom_call.1} parent=1 // pred_check
      _
    $region27: #{tpu_custom_call.1} parent=1 // pred_check_branch
      %228 = sbr.rel (0) target = $region29
    $region28: #{tpu_custom_call.1} parent=1 // pred_region
      %230 = vsyncadd [#allocation9], 0
      %s232 = sshll.u32 [#allocation8], 4
      %s233 = int_to_ptr.vmem [resolvable:$true] %s232
      %s234 = sshll.u32 %s2, 4
      %s235 = int_to_ptr.hbm [resolvable:$true] %s234
      %237 = dma.vmem_to_hbm [thread:$0]  %s233, 128, %s235, [#allocation9]
    $region29: #{tpu_custom_call.1} parent=1 // pred_fallthru
      _
    // Predicated region
    $region30: #{tpu_custom_call.1} parent=1 // pred_check
      _
    $region31: #{tpu_custom_call.1} parent=1 // pred_check_branch
      %239 = sbr.rel (0) target = $region33
    $region32: #{tpu_custom_call.1} parent=1 // pred_region
      %241 = dma.done [#allocation6], 128
    $region33: #{tpu_custom_call.1} parent=1 // pred_fallthru
      _
    // Predicated region
    $region34: #{tpu_custom_call.1} parent=1 // pred_check
      _
    $region35: #{tpu_custom_call.1} parent=1 // pred_check_branch
      %243 = sbr.rel (0) target = $region37
    $region36: #{tpu_custom_call.1} parent=1 // pred_region
      %245 = dma.done [#allocation9], 128
    $region37: #{tpu_custom_call.1} parent=1 // pred_fallthru
      _
    %246 = vsyncpa [#allocation5], 1
    %247 = vsyncpa [#allocation6], 1
    %248 = vsyncpa [#allocation9], 1

</llo_original>
